<compile_context>
chip_gen: v7x
topology: tpu7x:2x2x1
jax: 0.10.0
libtpu: 0.0.40
codegen_flags: <defaults>
</compile_context>

<pallas_src>
import math
from functools import partial

import jax
import jax.numpy as jnp
from jax.experimental import pallas as pl
from jax.experimental.pallas import tpu as pltpu


def _round_up(x, m):
    return ((x + m - 1) // m) * m


def _tile_plan(n):
    """Pick (TM, TK, Np): TM % 8 == 0, TK % 128 == 0, TM | Np, TK | Np."""
    if n > 512:
        tm, tk = 256, 512          # A tile = 256x512 bf16 = 256 KiB / buffer:
    else:                          # fits default scoped VMEM on v5e/v6e/v7x.
        tm = tk = _round_up(max(n, 8), 128)
    np_ = _round_up(n, tk)
    return tm, tk, np_


# ----------------------------------------------------------------------------
# Pallas kernels
# ----------------------------------------------------------------------------
def _proj_kernel(x_ref, w_ref, o_ref):
    """One row tile of xW = x @ W (MXU, f32 accumulate)."""
    o_ref[...] = jnp.dot(
        x_ref[...], w_ref[...], preferred_element_type=jnp.float32
    ).astype(o_ref.dtype)


def _agg_kernel(a_ref, xw_ref, o_ref, acc_ref):
    """acc[i] += A[i, k] @ xW[k]; write output tile on the last k step."""
    k = pl.program_id(1)

    @pl.when(k == 0)
    def _():
        acc_ref[...] = jnp.zeros_like(acc_ref)

    acc_ref[...] += jnp.dot(
        a_ref[...], xw_ref[...], preferred_element_type=jnp.float32
    )

    @pl.when(k == pl.num_programs(1) - 1)
    def _():
        o_ref[...] = acc_ref[...].astype(o_ref.dtype)


def _agg_kernel_residual(a_ref, xw_ref, xwr_ref, o_ref, acc_ref):
    """Same as _agg_kernel, with the residual projection fused at finalize."""
    k = pl.program_id(1)

    @pl.when(k == 0)
    def _():
        acc_ref[...] = jnp.zeros_like(acc_ref)

    acc_ref[...] += jnp.dot(
        a_ref[...], xw_ref[...], preferred_element_type=jnp.float32
    )

    @pl.when(k == pl.num_programs(1) - 1)
    def _():
        o_ref[...] = (acc_ref[...] + xwr_ref[...]).astype(o_ref.dtype)


# ----------------------------------------------------------------------------
# pallas_call wrappers
# ----------------------------------------------------------------------------
def _project(x_pad, w_pad, tm, out_dtype):
    np_, f_in = x_pad.shape
    fp = w_pad.shape[1]
    return pl.pallas_call(
        _proj_kernel,
        out_shape=jax.ShapeDtypeStruct((np_, fp), out_dtype),
        grid=(np_ // tm,),
        in_specs=[
            pl.BlockSpec((tm, f_in), lambda i: (i, 0)),
            pl.BlockSpec((f_in, fp), lambda i: (0, 0)),   # W stays resident
        ],
        out_specs=pl.BlockSpec((tm, fp), lambda i: (i, 0)),
        compiler_params=pltpu.CompilerParams(
            dimension_semantics=("parallel",)),
    )(x_pad, w_pad)


def _aggregate(adj_bf16, xw_bf16, xwr_f32, tm, tk):
    np_ = adj_bf16.shape[0]
    fp = xw_bf16.shape[1]
    grid = (np_ // tm, np_ // tk)            # reduction axis (k) last
    cp = pltpu.CompilerParams(
        dimension_semantics=("parallel", "arbitrary"))
    scratch = [pltpu.VMEM((tm, fp), jnp.float32)]
    out_shape = jax.ShapeDtypeStruct((np_, fp), jnp.float32)

    if xwr_f32 is not None:
        return pl.pallas_call(
            _agg_kernel_residual,
            out_shape=out_shape,
            grid=grid,
            in_specs=[
                pl.BlockSpec((tm, tk), lambda i, k: (i, k)),
                pl.BlockSpec((tk, fp), lambda i, k: (k, 0)),
                pl.BlockSpec((tm, fp), lambda i, k: (i, 0)),
            ],
            out_specs=pl.BlockSpec((tm, fp), lambda i, k: (i, 0)),
            scratch_shapes=scratch,
            compiler_params=cp,
        )(adj_bf16, xw_bf16, xwr_f32)

    return pl.pallas_call(
        _agg_kernel,
        out_shape=out_shape,
        grid=grid,
        in_specs=[
            pl.BlockSpec((tm, tk), lambda i, k: (i, k)),
            pl.BlockSpec((tk, fp), lambda i, k: (k, 0)),
        ],
        out_specs=pl.BlockSpec((tm, fp), lambda i, k: (i, 0)),
        scratch_shapes=scratch,
        compiler_params=cp,
    )(adj_bf16, xw_bf16)


# ----------------------------------------------------------------------------
# Normalized adjacency (matches gcn_conv: entry at (col[e], row[e]) summed)
# ----------------------------------------------------------------------------
def build_norm_adj(edge_index, num_nodes):
    row, col = edge_index[0], edge_index[1]
    deg = jnp.zeros((num_nodes,), jnp.float32).at[col].add(1.0)
    d_norm_in = jnp.sqrt(1.0 / deg[col])
    d_norm_out = jnp.sqrt(1.0 / deg[row])
    value = d_norm_in * d_norm_out
    value = jnp.nan_to_num(value, nan=0.0, posinf=0.0, neginf=0.0)
    # SparseTensor(row=col, col=row, value=value): duplicates accumulate.
    adj = jnp.zeros((num_nodes, num_nodes), jnp.float32).at[col, row].add(value)
    return adj


# ----------------------------------------------------------------------------
# Jitted forward (cached per shape / residual config)
# ----------------------------------------------------------------------------
@partial(jax.jit, static_argnames=("residual",))
def gcn_forward(x, edge_index, weight, weight_r, residual):
    n, f_in = x.shape
    f_out = weight.shape[1]
    tm, tk, np_ = _tile_plan(n)
    fp = _round_up(f_out, 128)               # lane-dense output

    x = x.astype(jnp.float32)
    adj = build_norm_adj(edge_index, n)

    # Zero-padding is exact: padded A rows/cols and padded x rows are zero.
    adj_p = jnp.pad(adj, ((0, np_ - n), (0, np_ - n))).astype(jnp.bfloat16)
    x_p = jnp.pad(x, ((0, np_ - n), (0, 0)))
    w_p = jnp.pad(weight.astype(jnp.float32), ((0, 0), (0, fp - f_out)))

    # out = A @ (x @ W) (+ x @ W_r): xW in bf16 halves the aggregation's
    # k-operand bytes; accumulation stays f32 on the MXU.
    xw = _project(x_p, w_p, tm, jnp.bfloat16)

    xwr = None
    if residual:
        wr_p = jnp.pad(weight_r.astype(jnp.float32), ((0, 0), (0, fp - f_out)))
        xwr = _project(x_p, wr_p, tm, jnp.float32)

    out_p = _aggregate(adj_p, xw, xwr, tm, tk)
    return out_p[:n, :f_out]


# ----------------------------------------------------------------------------
# Module-equivalent wrapper
# ----------------------------------------------------------------------------
class GraphConvolutionBase:
    def __init__(self, in_features, out_features, residual=False, key=None):
        self.residual = residual
        self.in_features = in_features
        self.out_features = out_features
        stdv = 1.0 / math.sqrt(out_features)
        if key is None:
            key = jax.random.PRNGKey(0)
        k1, k2 = jax.random.split(key)
        self.weight = jax.random.uniform(
            k1, (in_features, out_features), jnp.float32, -stdv, stdv)
        self.weight_r = jax.random.uniform(
            k2, (in_features, out_features), jnp.float32, -stdv, stdv)

    def __call__(self, x, edge_index, x0=None):
        # x0 is unused by the PyTorch forward as well.
        return gcn_forward(x, edge_index, self.weight, self.weight_r,
                           self.residual)


# ----------------------------------------------------------------------------
# Pure-JAX f32 reference
# ----------------------------------------------------------------------------
def reference_forward(x, edge_index, weight, weight_r, residual):
    adj = build_norm_adj(edge_index, x.shape[0])
    out = (adj @ x) @ weight
    if residual:
        out = out + x @ weight_r
    return out


if __name__ == "__main__":
    key = jax.random.PRNGKey(0)
    k_x, k_e, k_w = jax.random.split(key, 3)

    N, F_in, F_out, E = 64, 32, 16, 256
    x = jax.random.normal(k_x, (N, F_in), jnp.float32)
    edge_index = jax.random.randint(k_e, (2, E), 0, N, dtype=jnp.int32)

    # residual path
    layer = GraphConvolutionBase(F_in, F_out, residual=True, key=k_w)
    out = jax.block_until_ready(layer(x, edge_index))
    assert out.shape == (N, F_out)
    ref = reference_forward(x, edge_index, layer.weight, layer.weight_r, True)
    # bf16 A / xW operands with f32 accumulation -> small relative error vs f32 ref
    assert jnp.allclose(out, ref, atol=5e-2, rtol=5e-2), \
        f"max abs err {float(jnp.max(jnp.abs(out - ref)))}"

    # non-residual path
    layer2 = GraphConvolutionBase(F_in, F_out, residual=False, key=k_w)
    out2 = jax.block_until_ready(layer2(x, edge_index))
    assert out2.shape == (N, F_out)
    ref2 = reference_forward(x, edge_index, layer2.weight, layer2.weight_r, False)
    assert jnp.allclose(out2, ref2, atol=5e-2, rtol=5e-2), \
        f"max abs err {float(jnp.max(jnp.abs(out2 - ref2)))}"

    print("KERNEL_OK")
</pallas_src>

<mosaic_0001>
module attributes {stable_mosaic.version = 11 : i64} {
  func.func private @main(%arg0: i32) attributes {dimension_semantics = [#tpu.dimension_semantics<core_parallel>], iteration_bounds = array<i64: 2>, tpu.core_type = #tpu.core_type<sc_scalar_subcore>, window_params = []} {
    return
  }
}

module attributes {stable_mosaic.version = 11 : i64} {
  func.func private @main(%arg0: i32) attributes {dimension_semantics = [#tpu.dimension_semantics<core_parallel>], iteration_bounds = array<i64: 2>, tpu.core_type = #tpu.core_type<sc_scalar_subcore>, window_params = []} {
    return
  }
}

module attributes {stable_mosaic.version = 11 : i64} {
  func.func @_proj_kernel(%arg0: i32, %arg1: memref<128x32xf32, #tpu.memory_space<vmem>>, %arg2: memref<32x128xf32, #tpu.memory_space<vmem>>, %arg3: memref<128x128xf32, #tpu.memory_space<vmem>>) attributes {dimension_semantics = [#tpu.dimension_semantics<parallel>], iteration_bounds = array<i64: 1>, scalar_prefetch = 0 : i64, scratch_operands = 0 : i64, tpu.core_type = #tpu.core_type<tc>, window_params = [{transform_indices = @transform_0, window_bounds = array<i64: 128, 32>}, {pipeline_mode = #tpu.pipeline_mode<synchronous>, transform_indices = @transform_1, window_bounds = array<i64: 32, 128>}, {transform_indices = @transform_2, window_bounds = array<i64: 128, 128>}]} {
    %c0 = arith.constant 0 : index
    %c0_0 = arith.constant 0 : index
    %0 = vector.load %arg1[%c0, %c0_0] : memref<128x32xf32, #tpu.memory_space<vmem>>, vector<128x32xf32>
    %c0_1 = arith.constant 0 : index
    %c0_2 = arith.constant 0 : index
    %1 = vector.load %arg2[%c0_1, %c0_2] : memref<32x128xf32, #tpu.memory_space<vmem>>, vector<32x128xf32>
    %cst = arith.constant dense<0.000000e+00> : vector<128x128xf32>
    %2 = tpu.matmul %0, %1, %cst {dimension_numbers = #tpu.dot_dimension_numbers<[1], [0], [0], [1], [0, 0, 1, 1], [], []>} : vector<128x32xf32>, vector<32x128xf32>, vector<128x128xf32> -> vector<128x128xf32>
    %c0_3 = arith.constant 0 : index
    %c0_4 = arith.constant 0 : index
    %3 = vector.load %arg3[%c0_3, %c0_4] : memref<128x128xf32, #tpu.memory_space<vmem>>, vector<128x128xf32>
    tpu.vector_store %arg3[%c0_3, %c0_4], %2 {strides = array<i32>} : memref<128x128xf32, #tpu.memory_space<vmem>>, vector<128x128xf32>,
    return
  }
  func.func @transform_0(%arg0: i32) -> (i32, i32) {
    %c0_i32 = arith.constant 0 : i32
    %c0_i32_0 = arith.constant 0 : i32
    return %arg0, %c0_i32 : i32, i32
  }
  func.func @transform_1(%arg0: i32) -> (i32, i32) {
    %c0_i32 = arith.constant 0 : i32
    %c0_i32_0 = arith.constant 0 : i32
    %c0_i32_1 = arith.constant 0 : i32
    return %c0_i32, %c0_i32_0 : i32, i32
  }
  func.func @transform_2(%arg0: i32) -> (i32, i32) {
    %c0_i32 = arith.constant 0 : i32
    %c0_i32_0 = arith.constant 0 : i32
    return %arg0, %c0_i32 : i32, i32
  }
}

module attributes {stable_mosaic.version = 11 : i64} {
  func.func @_proj_kernel(%arg0: i32, %arg1: memref<128x32xf32, #tpu.memory_space<vmem>>, %arg2: memref<32x128xf32, #tpu.memory_space<vmem>>, %arg3: memref<128x128xbf16, #tpu.memory_space<vmem>>) attributes {dimension_semantics = [#tpu.dimension_semantics<parallel>], iteration_bounds = array<i64: 1>, scalar_prefetch = 0 : i64, scratch_operands = 0 : i64, tpu.core_type = #tpu.core_type<tc>, window_params = [{transform_indices = @transform_0, window_bounds = array<i64: 128, 32>}, {pipeline_mode = #tpu.pipeline_mode<synchronous>, transform_indices = @transform_1, window_bounds = array<i64: 32, 128>}, {transform_indices = @transform_2, window_bounds = array<i64: 128, 128>}]} {
    %c0 = arith.constant 0 : index
    %c0_0 = arith.constant 0 : index
    %0 = vector.load %arg1[%c0, %c0_0] : memref<128x32xf32, #tpu.memory_space<vmem>>, vector<128x32xf32>
    %c0_1 = arith.constant 0 : index
    %c0_2 = arith.constant 0 : index
    %1 = vector.load %arg2[%c0_1, %c0_2] : memref<32x128xf32, #tpu.memory_space<vmem>>, vector<32x128xf32>
    %cst = arith.constant dense<0.000000e+00> : vector<128x128xf32>
    %2 = tpu.matmul %0, %1, %cst {dimension_numbers = #tpu.dot_dimension_numbers<[1], [0], [0], [1], [0, 0, 1, 1], [], []>} : vector<128x32xf32>, vector<32x128xf32>, vector<128x128xf32> -> vector<128x128xf32>
    %3 = arith.truncf %2 : vector<128x128xf32> to vector<128x128xbf16>
    %c0_3 = arith.constant 0 : index
    %c0_4 = arith.constant 0 : index
    %4 = vector.load %arg3[%c0_3, %c0_4] : memref<128x128xbf16, #tpu.memory_space<vmem>>, vector<128x128xbf16>
    tpu.vector_store %arg3[%c0_3, %c0_4], %3 {strides = array<i32>} : memref<128x128xbf16, #tpu.memory_space<vmem>>, vector<128x128xbf16>,
    return
  }
  func.func @transform_0(%arg0: i32) -> (i32, i32) {
    %c0_i32 = arith.constant 0 : i32
    %c0_i32_0 = arith.constant 0 : i32
    return %arg0, %c0_i32 : i32, i32
  }
  func.func @transform_1(%arg0: i32) -> (i32, i32) {
    %c0_i32 = arith.constant 0 : i32
    %c0_i32_0 = arith.constant 0 : i32
    %c0_i32_1 = arith.constant 0 : i32
    return %c0_i32, %c0_i32_0 : i32, i32
  }
  func.func @transform_2(%arg0: i32) -> (i32, i32) {
    %c0_i32 = arith.constant 0 : i32
    %c0_i32_0 = arith.constant 0 : i32
    return %arg0, %c0_i32 : i32, i32
  }
}

module attributes {stable_mosaic.version = 11 : i64} {
  func.func @_agg_kernel_residual(%arg0: i32, %arg1: i32, %arg2: memref<128x128xbf16, #tpu.memory_space<vmem>>, %arg3: memref<128x128xbf16, #tpu.memory_space<vmem>>, %arg4: memref<128x128xf32, #tpu.memory_space<vmem>>, %arg5: memref<128x128xf32, #tpu.memory_space<vmem>>, %arg6: memref<128x128xf32, #tpu.memory_space<vmem>>) attributes {dimension_semantics = [#tpu.dimension_semantics<parallel>, #tpu.dimension_semantics<arbitrary>], iteration_bounds = array<i64: 1, 1>, scalar_prefetch = 0 : i64, scratch_operands = 1 : i64, tpu.core_type = #tpu.core_type<tc>, window_params = [{transform_indices = @transform_0, window_bounds = array<i64: 128, 128>}, {transform_indices = @transform_1, window_bounds = array<i64: 128, 128>}, {transform_indices = @transform_2, window_bounds = array<i64: 128, 128>}, {transform_indices = @transform_3, window_bounds = array<i64: 128, 128>}]} {
    %c0_i32 = arith.constant 0 : i32
    %0 = arith.cmpi eq, %arg1, %c0_i32 : i32
    %1 = arith.extui %0 : i1 to i32
    %c0_i32_0 = arith.constant 0 : i32
    %2 = arith.cmpi ne, %1, %c0_i32_0 : i32
    scf.if %2 {
      %cst_10 = arith.constant 0.000000e+00 : f32
      %12 = vector.broadcast %cst_10 : f32 to vector<128x128xf32>
      %c0_11 = arith.constant 0 : index
      %c0_12 = arith.constant 0 : index
      %13 = vector.load %arg6[%c0_11, %c0_12] : memref<128x128xf32, #tpu.memory_space<vmem>>, vector<128x128xf32>
      tpu.vector_store %arg6[%c0_11, %c0_12], %12 {strides = array<i32>} : memref<128x128xf32, #tpu.memory_space<vmem>>, vector<128x128xf32>,
    } else {
    }
    %c0 = arith.constant 0 : index
    %c0_1 = arith.constant 0 : index
    %3 = vector.load %arg6[%c0, %c0_1] : memref<128x128xf32, #tpu.memory_space<vmem>>, vector<128x128xf32>
    %c0_2 = arith.constant 0 : index
    %c0_3 = arith.constant 0 : index
    %4 = vector.load %arg2[%c0_2, %c0_3] : memref<128x128xbf16, #tpu.memory_space<vmem>>, vector<128x128xbf16>
    %c0_4 = arith.constant 0 : index
    %c0_5 = arith.constant 0 : index
    %5 = vector.load %arg3[%c0_4, %c0_5] : memref<128x128xbf16, #tpu.memory_space<vmem>>, vector<128x128xbf16>
    %cst = arith.constant dense<0.000000e+00> : vector<128x128xf32>
    %6 = tpu.matmul %4, %5, %cst {dimension_numbers = #tpu.dot_dimension_numbers<[1], [0], [0], [1], [0, 0, 1, 1], [], []>} : vector<128x128xbf16>, vector<128x128xbf16>, vector<128x128xf32> -> vector<128x128xf32>
    %7 = arith.addf %3, %6 : vector<128x128xf32>
    %c0_6 = arith.constant 0 : index
    %c0_7 = arith.constant 0 : index
    %8 = vector.load %arg6[%c0_6, %c0_7] : memref<128x128xf32, #tpu.memory_space<vmem>>, vector<128x128xf32>
    tpu.vector_store %arg6[%c0_6, %c0_7], %7 {strides = array<i32>} : memref<128x128xf32, #tpu.memory_space<vmem>>, vector<128x128xf32>,
    %c0_i32_8 = arith.constant 0 : i32
    %9 = arith.cmpi eq, %arg1, %c0_i32_8 : i32
    %10 = arith.extui %9 : i1 to i32
    %c0_i32_9 = arith.constant 0 : i32
    %11 = arith.cmpi ne, %10, %c0_i32_9 : i32
    scf.if %11 {
      %c0_10 = arith.constant 0 : index
      %c0_11 = arith.constant 0 : index
      %12 = vector.load %arg6[%c0_10, %c0_11] : memref<128x128xf32, #tpu.memory_space<vmem>>, vector<128x128xf32>
      %c0_12 = arith.constant 0 : index
      %c0_13 = arith.constant 0 : index
      %13 = vector.load %arg4[%c0_12, %c0_13] : memref<128x128xf32, #tpu.memory_space<vmem>>, vector<128x128xf32>
      %14 = arith.addf %12, %13 : vector<128x128xf32>
      %c0_14 = arith.constant 0 : index
      %c0_15 = arith.constant 0 : index
      %15 = vector.load %arg5[%c0_14, %c0_15] : memref<128x128xf32, #tpu.memory_space<vmem>>, vector<128x128xf32>
      tpu.vector_store %arg5[%c0_14, %c0_15], %14 {strides = array<i32>} : memref<128x128xf32, #tpu.memory_space<vmem>>, vector<128x128xf32>,
    } else {
    }
    return
  }
  func.func @transform_0(%arg0: i32, %arg1: i32) -> (i32, i32) {
    %c0_i32 = arith.constant 0 : i32
    return %arg0, %arg1 : i32, i32
  }
  func.func @transform_1(%arg0: i32, %arg1: i32) -> (i32, i32) {
    %c0_i32 = arith.constant 0 : i32
    %c0_i32_0 = arith.constant 0 : i32
    return %arg1, %c0_i32 : i32, i32
  }
  func.func @transform_2(%arg0: i32, %arg1: i32) -> (i32, i32) {
    %c0_i32 = arith.constant 0 : i32
    %c0_i32_0 = arith.constant 0 : i32
    return %arg0, %c0_i32 : i32, i32
  }
  func.func @transform_3(%arg0: i32, %arg1: i32) -> (i32, i32) {
    %c0_i32 = arith.constant 0 : i32
    %c0_i32_0 = arith.constant 0 : i32
    return %arg0, %c0_i32 : i32, i32
  }
}

</mosaic_0001>

<llo_original>
// kernel: gcn_forward.4
$region0: #{gcn_forward.4}
  #allocation0 [shape = 'u32[]', space=smem, size = 0x4, offset = 0x4, fixed_abs, tag = 'smem constant byte address 0x4 - core index']
  #allocation1 [shape = 'u32[144,128]{1,0:T(1,128)}', space=vmem, size = 0x12000, scoped, tag = 'internal scratch']
  %s0 = inlined_call_operand.vmem [shape: f32[128,32], index: 0, kind: input, shape index: {}]
  %s1 = inlined_call_operand.vmem [shape: f32[32,128], index: 1, kind: input, shape index: {}]
  %s2 = inlined_call_operand.vmem [shape: f32[128,128], index: 2, kind: output, shape index: {}]
  %s3 = sld [smem:[#allocation0]]
  $region18: #{gcn_forward.4} parent=0
    _
  %s5 = ssub.s32 1, %s3
  %s6 = scalar_select 0, %s5, %s3
  // Predicated region
  $region2: #{gcn_forward.4} parent=0 // pred_check
    _
  $region3: #{gcn_forward.4} parent=0 // pred_check_branch
    %8 = sbr.rel (0) target = $region5
  $region4: #{gcn_forward.4} parent=0 // pred_region
    _
  $region5: #{gcn_forward.4} parent=0 // pred_fallthru
    _
  // Predicated region
  $region6: #{gcn_forward.4} parent=0 // pred_check
    _
  $region7: #{gcn_forward.4} parent=0 // pred_check_branch
    %10 = sbr.rel (0) target = $region9
  $region8: #{gcn_forward.4} parent=0 // pred_region
    _
  $region9: #{gcn_forward.4} parent=0 // pred_fallthru
    _
  %v11 = vld [vmem:[%s0] sm:$0xff]
  %v12 = vld [vmem:[%s0 + $0x8] sm:$0xff]
  %v13 = vld [vmem:[%s0 + $0x10] sm:$0xff]
  %v14 = vld [vmem:[%s0 + $0x18] sm:$0xff]
  %v15 = vld [vmem:[%s0 + $0x20] sm:$0xff]
  %v16 = vld [vmem:[%s0 + $0x28] sm:$0xff]
  %v17 = vld [vmem:[%s0 + $0x30] sm:$0xff]
  %v18 = vld [vmem:[%s0 + $0x38] sm:$0xff]
  %v19 = vld [vmem:[%s0 + $0x40] sm:$0xff]
  %v20 = vld [vmem:[%s0 + $0x48] sm:$0xff]
  %v21 = vld [vmem:[%s0 + $0x50] sm:$0xff]
  %v22 = vld [vmem:[%s0 + $0x58] sm:$0xff]
  %v23 = vld [vmem:[%s0 + $0x60] sm:$0xff]
  %v24 = vld [vmem:[%s0 + $0x68] sm:$0xff]
  %v25 = vld [vmem:[%s0 + $0x70] sm:$0xff]
  %v26 = vld [vmem:[%s0 + $0x78] sm:$0xff]
  %v27 = vld [vmem:[%s1] sm:$0xff]
  %v28 = vld [vmem:[%s1 + $0x8] sm:$0xff]
  %v29 = vld [vmem:[%s1 + $0x10] sm:$0xff]
  %v30 = vld [vmem:[%s1 + $0x18] sm:$0xff]
  %vm31 = vcmask 261120
  %v33 = vsel %vm31, %v11, 0
  %v36 = vsel %vm31, %v12, 0
  %v39 = vsel %vm31, %v13, 0
  %v42 = vsel %vm31, %v14, 0
  %v45 = vsel %vm31, %v15, 0
  %v48 = vsel %vm31, %v16, 0
  %v51 = vsel %vm31, %v17, 0
  %v54 = vsel %vm31, %v18, 0
  %v57 = vsel %vm31, %v19, 0
  %v60 = vsel %vm31, %v20, 0
  %v63 = vsel %vm31, %v21, 0
  %v66 = vsel %vm31, %v22, 0
  %v69 = vsel %vm31, %v23, 0
  %v72 = vsel %vm31, %v24, 0
  %v75 = vsel %vm31, %v25, 0
  %v78 = vsel %vm31, %v26, 0
  %80 = vmatprep.subr.mxu0 0.0
  %81 = vmatpush1.msra.mxu0 %v27
  %82 = vmatprep.subr.mxu0 0.0
  %83 = vmatpush1.msra.mxu0 %v28
  %84 = vmatprep.subr.mxu0 0.0
  %85 = vmatpush1.msra.mxu0 %v29
  %86 = vmatprep.subr.mxu0 0.0
  %87 = vmatpush1.msra.mxu0 %v30
  %88 = vmatprep.subr.mxu0 0.0
  %89 = vmatpush1.msra.mxu0 0.0
  %90 = vmatprep.subr.mxu0 0.0
  %91 = vmatpush1.msra.mxu0 0.0
  %92 = vmatprep.subr.mxu0 0.0
  %93 = vmatpush1.msra.mxu0 0.0
  %94 = vmatprep.subr.mxu0 0.0
  %95 = vmatpush1.msra.mxu0 0.0
  %96 = vmatprep.subr.mxu0 0.0
  %97 = vmatpush1.msra.mxu0 0.0
  %98 = vmatprep.subr.mxu0 0.0
  %99 = vmatpush1.msra.mxu0 0.0
  %100 = vmatprep.subr.mxu0 0.0
  %101 = vmatpush1.msra.mxu0 0.0
  %102 = vmatprep.subr.mxu0 0.0
  %103 = vmatpush1.msra.mxu0 0.0
  %104 = vmatprep.subr.mxu0 0.0
  %105 = vmatpush1.msra.mxu0 0.0
  %106 = vmatprep.subr.mxu0 0.0
  %107 = vmatpush1.msra.mxu0 0.0
  %108 = vmatprep.subr.mxu0 0.0
  %109 = vmatpush1.msra.mxu0 0.0
  %110 = vmatprep.subr.mxu0 0.0
  %111 = vmatpush1.msra.mxu0 0.0
  %112 = vmatprep.subr.mxu0 0.0
  %113 = vmatpush1.msra.mxu0 0.0
  %114 = vmatprep.subr.mxu0 0.0
  %115 = vmatpush1.msra.mxu0 0.0
  %116 = vmatprep.subr.mxu0 0.0
  %117 = vmatpush1.msra.mxu0 0.0
  %118 = vmatprep.subr.mxu0 0.0
  %119 = vmatpush1.msra.mxu0 0.0
  %120 = vmatprep.subr.mxu0 0.0
  %121 = vmatpush1.msra.mxu0 0.0
  %122 = vmatprep.subr.mxu0 0.0
  %123 = vmatpush1.msra.mxu0 0.0
  %124 = vmatprep.subr.mxu0 0.0
  %125 = vmatpush1.msra.mxu0 0.0
  %126 = vmatprep.subr.mxu0 0.0
  %127 = vmatpush1.msra.mxu0 0.0
  %128 = vmatprep.subr.mxu0 0.0
  %129 = vmatpush1.msra.mxu0 0.0
  %130 = vmatprep.subr.mxu0 0.0
  %131 = vmatpush1.msra.mxu0 0.0
  %132 = vmatprep.subr.mxu0 0.0
  %133 = vmatpush1.msra.mxu0 0.0
  %134 = vmatprep.subr.mxu0 0.0
  %135 = vmatpush1.msra.mxu0 0.0
  %136 = vmatprep.subr.mxu0 0.0
  %137 = vmatpush1.msra.mxu0 0.0
  %138 = vmatprep.subr.mxu0 0.0
  %139 = vmatpush1.msra.mxu0 0.0
  %140 = vmatprep.subr.mxu0 0.0
  %141 = vmatpush1.msra.mxu0 0.0
  %142 = vmatprep.subr.mxu0 0.0
  %143 = vmatpush1.msra.mxu0 0.0
  %144 = vmatprep.mubr.f32.mxu0 0.0
  %145 = vmatmul.mubr.f32.gmra.mrb[0].mxu0 %v33
  %v146 = vpop.f32.mrb[0].mxu0
  %v147 = vadd.f32 0.0, %v146
  %v148 = vpop.f32.mrb[0].mxu0
  %149 = vmatprep.mubr.f32.mxu0 0.0
  %150 = vmatmul.mubr.f32.gmra.mrb[0].mxu0 %v36
  %v151 = vpop.f32.mrb[0].mxu0
  %v152 = vadd.f32 0.0, %v151
  %v153 = vpop.f32.mrb[0].mxu0
  %154 = vmatprep.mubr.f32.mxu0 0.0
  %155 = vmatmul.mubr.f32.gmra.mrb[0].mxu0 %v39
  %v156 = vpop.f32.mrb[0].mxu0
  %v157 = vadd.f32 0.0, %v156
  %v158 = vpop.f32.mrb[0].mxu0
  %159 = vmatprep.mubr.f32.mxu0 0.0
  %160 = vmatmul.mubr.f32.gmra.mrb[0].mxu0 %v42
  %v161 = vpop.f32.mrb[0].mxu0
  %v162 = vadd.f32 0.0, %v161
  %v163 = vpop.f32.mrb[0].mxu0
  %164 = vmatprep.mubr.f32.mxu0 0.0
  %165 = vmatmul.mubr.f32.gmra.mrb[0].mxu0 %v45
  %v166 = vpop.f32.mrb[0].mxu0
  %v167 = vadd.f32 0.0, %v166
  %v168 = vpop.f32.mrb[0].mxu0
  %169 = vmatprep.mubr.f32.mxu0 0.0
  %170 = vmatmul.mubr.f32.gmra.mrb[0].mxu0 %v48
  %v171 = vpop.f32.mrb[0].mxu0
  %v172 = vadd.f32 0.0, %v171
  %v173 = vpop.f32.mrb[0].mxu0
  %174 = vmatprep.mubr.f32.mxu0 0.0
  %175 = vmatmul.mubr.f32.gmra.mrb[0].mxu0 %v51
  %v176 = vpop.f32.mrb[0].mxu0
  %v177 = vadd.f32 0.0, %v176
  %v178 = vpop.f32.mrb[0].mxu0
  %179 = vmatprep.mubr.f32.mxu0 0.0
  %180 = vmatmul.mubr.f32.gmra.mrb[0].mxu0 %v54
  %v181 = vpop.f32.mrb[0].mxu0
  %v182 = vadd.f32 0.0, %v181
  %v183 = vpop.f32.mrb[0].mxu0
  %184 = vmatprep.mubr.f32.mxu0 0.0
  %185 = vmatmul.mubr.f32.gmra.mrb[0].mxu0 %v57
  %v186 = vpop.f32.mrb[0].mxu0
  %v187 = vadd.f32 0.0, %v186
  %v188 = vpop.f32.mrb[0].mxu0
  %189 = vmatprep.mubr.f32.mxu0 0.0
  %190 = vmatmul.mubr.f32.gmra.mrb[0].mxu0 %v60
  %v191 = vpop.f32.mrb[0].mxu0
  %v192 = vadd.f32 0.0, %v191
  %v193 = vpop.f32.mrb[0].mxu0
  %194 = vmatprep.mubr.f32.mxu0 0.0
  %195 = vmatmul.mubr.f32.gmra.mrb[0].mxu0 %v63
  %v196 = vpop.f32.mrb[0].mxu0
  %v197 = vadd.f32 0.0, %v196
  %v198 = vpop.f32.mrb[0].mxu0
  %199 = vmatprep.mubr.f32.mxu0 0.0
  %200 = vmatmul.mubr.f32.gmra.mrb[0].mxu0 %v66
  %v201 = vpop.f32.mrb[0].mxu0
  %v202 = vadd.f32 0.0, %v201
  %v203 = vpop.f32.mrb[0].mxu0
  %204 = vmatprep.mubr.f32.mxu0 0.0
  %205 = vmatmul.mubr.f32.gmra.mrb[0].mxu0 %v69
  %v206 = vpop.f32.mrb[0].mxu0
  %v207 = vadd.f32 0.0, %v206
  %v208 = vpop.f32.mrb[0].mxu0
  %209 = vmatprep.mubr.f32.mxu0 0.0
  %210 = vmatmul.mubr.f32.gmra.mrb[0].mxu0 %v72
  %v211 = vpop.f32.mrb[0].mxu0
  %v212 = vadd.f32 0.0, %v211
  %v213 = vpop.f32.mrb[0].mxu0
  %214 = vmatprep.mubr.f32.mxu0 0.0
  %215 = vmatmul.mubr.f32.gmra.mrb[0].mxu0 %v75
  %v216 = vpop.f32.mrb[0].mxu0
  %v217 = vadd.f32 0.0, %v216
  %v218 = vpop.f32.mrb[0].mxu0
  %219 = vmatprep.mubr.f32.mxu0 0.0
  %220 = vmatmul.mubr.f32.gmra.mrb[0].mxu0 %v78
  %v221 = vpop.f32.mrb[0].mxu0
  %v222 = vadd.f32 0.0, %v221
  %v223 = vpop.f32.mrb[0].mxu0
  %224 = vdwg.mxu0
  %225 = vst [vmem:[%s2] sm:$0xff] %v147
  %226 = vst [vmem:[%s2 + $0x8] sm:$0xff] %v152
  %227 = vst [vmem:[%s2 + $0x10] sm:$0xff] %v157
  %228 = vst [vmem:[%s2 + $0x18] sm:$0xff] %v162
  %229 = vst [vmem:[%s2 + $0x20] sm:$0xff] %v167
  %230 = vst [vmem:[%s2 + $0x28] sm:$0xff] %v172
  %231 = vst [vmem:[%s2 + $0x30] sm:$0xff] %v177
  %232 = vst [vmem:[%s2 + $0x38] sm:$0xff] %v182
  %233 = vst [vmem:[%s2 + $0x40] sm:$0xff] %v187
  %234 = vst [vmem:[%s2 + $0x48] sm:$0xff] %v192
  %235 = vst [vmem:[%s2 + $0x50] sm:$0xff] %v197
  %236 = vst [vmem:[%s2 + $0x58] sm:$0xff] %v202
  %237 = vst [vmem:[%s2 + $0x60] sm:$0xff] %v207
  %238 = vst [vmem:[%s2 + $0x68] sm:$0xff] %v212
  %239 = vst [vmem:[%s2 + $0x70] sm:$0xff] %v217
  %240 = vst [vmem:[%s2 + $0x78] sm:$0xff] %v222
  // Predicated region
  $region10: #{gcn_forward.4} parent=0 // pred_check
    _
  $region11: #{gcn_forward.4} parent=0 // pred_check_branch
    %242 = sbr.rel (0) target = $region13
  $region12: #{gcn_forward.4} parent=0 // pred_region
    _
  $region13: #{gcn_forward.4} parent=0 // pred_fallthru
    _
  // Predicated region
  $region14: #{gcn_forward.4} parent=0 // pred_check
    _
  $region15: #{gcn_forward.4} parent=0 // pred_check_branch
    %244 = sbr.rel (0) target = $region17
  $region16: #{gcn_forward.4} parent=0 // pred_region
    _
  $region17: #{gcn_forward.4} parent=0 // pred_fallthru
    _

// kernel: gcn_forward.3
$region0: #{gcn_forward.3}
  #allocation0 [shape = 'u32[]', space=smem, size = 0x4, offset = 0x4, fixed_abs, tag = 'smem constant byte address 0x4 - core index']
  #allocation1 [shape = 'u32[144,128]{1,0:T(1,128)}', space=vmem, size = 0x12000, scoped, tag = 'internal scratch']
  %s0 = inlined_call_operand.vmem [shape: f32[128,32], index: 0, kind: input, shape index: {}]
  %s1 = inlined_call_operand.vmem [shape: f32[32,128], index: 1, kind: input, shape index: {}]
  %s2 = inlined_call_operand.vmem [shape: bf16[128,128], index: 2, kind: output, shape index: {}]
  %s3 = sld [smem:[#allocation0]]
  $region18: #{gcn_forward.3} parent=0
    _
  %s5 = ssub.s32 1, %s3
  %s6 = scalar_select 0, %s5, %s3
  // Predicated region
  $region2: #{gcn_forward.3} parent=0 // pred_check
    _
  $region3: #{gcn_forward.3} parent=0 // pred_check_branch
    %8 = sbr.rel (0) target = $region5
  $region4: #{gcn_forward.3} parent=0 // pred_region
    _
  $region5: #{gcn_forward.3} parent=0 // pred_fallthru
    _
  // Predicated region
  $region6: #{gcn_forward.3} parent=0 // pred_check
    _
  $region7: #{gcn_forward.3} parent=0 // pred_check_branch
    %10 = sbr.rel (0) target = $region9
  $region8: #{gcn_forward.3} parent=0 // pred_region
    _
  $region9: #{gcn_forward.3} parent=0 // pred_fallthru
    _
  %v11 = vld [vmem:[%s0] sm:$0xff]
  %v12 = vld [vmem:[%s0 + $0x8] sm:$0xff]
  %v13 = vld [vmem:[%s0 + $0x10] sm:$0xff]
  %v14 = vld [vmem:[%s0 + $0x18] sm:$0xff]
  %v15 = vld [vmem:[%s0 + $0x20] sm:$0xff]
  %v16 = vld [vmem:[%s0 + $0x28] sm:$0xff]
  %v17 = vld [vmem:[%s0 + $0x30] sm:$0xff]
  %v18 = vld [vmem:[%s0 + $0x38] sm:$0xff]
  %v19 = vld [vmem:[%s0 + $0x40] sm:$0xff]
  %v20 = vld [vmem:[%s0 + $0x48] sm:$0xff]
  %v21 = vld [vmem:[%s0 + $0x50] sm:$0xff]
  %v22 = vld [vmem:[%s0 + $0x58] sm:$0xff]
  %v23 = vld [vmem:[%s0 + $0x60] sm:$0xff]
  %v24 = vld [vmem:[%s0 + $0x68] sm:$0xff]
  %v25 = vld [vmem:[%s0 + $0x70] sm:$0xff]
  %v26 = vld [vmem:[%s0 + $0x78] sm:$0xff]
  %v27 = vld [vmem:[%s1] sm:$0xff]
  %v28 = vld [vmem:[%s1 + $0x8] sm:$0xff]
  %v29 = vld [vmem:[%s1 + $0x10] sm:$0xff]
  %v30 = vld [vmem:[%s1 + $0x18] sm:$0xff]
  %vm31 = vcmask 261120
  %v33 = vsel %vm31, %v11, 0
  %v36 = vsel %vm31, %v12, 0
  %v39 = vsel %vm31, %v13, 0
  %v42 = vsel %vm31, %v14, 0
  %v45 = vsel %vm31, %v15, 0
  %v48 = vsel %vm31, %v16, 0
  %v51 = vsel %vm31, %v17, 0
  %v54 = vsel %vm31, %v18, 0
  %v57 = vsel %vm31, %v19, 0
  %v60 = vsel %vm31, %v20, 0
  %v63 = vsel %vm31, %v21, 0
  %v66 = vsel %vm31, %v22, 0
  %v69 = vsel %vm31, %v23, 0
  %v72 = vsel %vm31, %v24, 0
  %v75 = vsel %vm31, %v25, 0
  %v78 = vsel %vm31, %v26, 0
  %80 = vmatprep.subr.mxu0 0.0
  %81 = vmatpush1.msra.mxu0 %v27
  %82 = vmatprep.subr.mxu0 0.0
  %83 = vmatpush1.msra.mxu0 %v28
  %84 = vmatprep.subr.mxu0 0.0
  %85 = vmatpush1.msra.mxu0 %v29
  %86 = vmatprep.subr.mxu0 0.0
  %87 = vmatpush1.msra.mxu0 %v30
  %88 = vmatprep.subr.mxu0 0.0
  %89 = vmatpush1.msra.mxu0 0.0
  %90 = vmatprep.subr.mxu0 0.0
  %91 = vmatpush1.msra.mxu0 0.0
  %92 = vmatprep.subr.mxu0 0.0
  %93 = vmatpush1.msra.mxu0 0.0
  %94 = vmatprep.subr.mxu0 0.0
  %95 = vmatpush1.msra.mxu0 0.0
  %96 = vmatprep.subr.mxu0 0.0
  %97 = vmatpush1.msra.mxu0 0.0
  %98 = vmatprep.subr.mxu0 0.0
  %99 = vmatpush1.msra.mxu0 0.0
  %100 = vmatprep.subr.mxu0 0.0
  %101 = vmatpush1.msra.mxu0 0.0
  %102 = vmatprep.subr.mxu0 0.0
  %103 = vmatpush1.msra.mxu0 0.0
  %104 = vmatprep.subr.mxu0 0.0
  %105 = vmatpush1.msra.mxu0 0.0
  %106 = vmatprep.subr.mxu0 0.0
  %107 = vmatpush1.msra.mxu0 0.0
  %108 = vmatprep.subr.mxu0 0.0
  %109 = vmatpush1.msra.mxu0 0.0
  %110 = vmatprep.subr.mxu0 0.0
  %111 = vmatpush1.msra.mxu0 0.0
  %112 = vmatprep.subr.mxu0 0.0
  %113 = vmatpush1.msra.mxu0 0.0
  %114 = vmatprep.subr.mxu0 0.0
  %115 = vmatpush1.msra.mxu0 0.0
  %116 = vmatprep.subr.mxu0 0.0
  %117 = vmatpush1.msra.mxu0 0.0
  %118 = vmatprep.subr.mxu0 0.0
  %119 = vmatpush1.msra.mxu0 0.0
  %120 = vmatprep.subr.mxu0 0.0
  %121 = vmatpush1.msra.mxu0 0.0
  %122 = vmatprep.subr.mxu0 0.0
  %123 = vmatpush1.msra.mxu0 0.0
  %124 = vmatprep.subr.mxu0 0.0
  %125 = vmatpush1.msra.mxu0 0.0
  %126 = vmatprep.subr.mxu0 0.0
  %127 = vmatpush1.msra.mxu0 0.0
  %128 = vmatprep.subr.mxu0 0.0
  %129 = vmatpush1.msra.mxu0 0.0
  %130 = vmatprep.subr.mxu0 0.0
  %131 = vmatpush1.msra.mxu0 0.0
  %132 = vmatprep.subr.mxu0 0.0
  %133 = vmatpush1.msra.mxu0 0.0
  %134 = vmatprep.subr.mxu0 0.0
  %135 = vmatpush1.msra.mxu0 0.0
  %136 = vmatprep.subr.mxu0 0.0
  %137 = vmatpush1.msra.mxu0 0.0
  %138 = vmatprep.subr.mxu0 0.0
  %139 = vmatpush1.msra.mxu0 0.0
  %140 = vmatprep.subr.mxu0 0.0
  %141 = vmatpush1.msra.mxu0 0.0
  %142 = vmatprep.subr.mxu0 0.0
  %143 = vmatpush1.msra.mxu0 0.0
  %144 = vmatprep.mubr.f32.mxu0 0.0
  %145 = vmatmul.mubr.f32.gmra.mrb[0].mxu0 %v33
  %v146 = vpop.f32.mrb[0].mxu0
  %v147 = vadd.f32 0.0, %v146
  %v148 = vpop.f32.mrb[0].mxu0
  %149 = vmatprep.mubr.f32.mxu0 0.0
  %150 = vmatmul.mubr.f32.gmra.mrb[0].mxu0 %v36
  %v151 = vpop.f32.mrb[0].mxu0
  %v152 = vadd.f32 0.0, %v151
  %v153 = vpop.f32.mrb[0].mxu0
  %154 = vmatprep.mubr.f32.mxu0 0.0
  %155 = vmatmul.mubr.f32.gmra.mrb[0].mxu0 %v39
  %v156 = vpop.f32.mrb[0].mxu0
  %v157 = vadd.f32 0.0, %v156
  %v158 = vpop.f32.mrb[0].mxu0
  %159 = vmatprep.mubr.f32.mxu0 0.0
  %160 = vmatmul.mubr.f32.gmra.mrb[0].mxu0 %v42
  %v161 = vpop.f32.mrb[0].mxu0
  %v162 = vadd.f32 0.0, %v161
  %v163 = vpop.f32.mrb[0].mxu0
  %164 = vmatprep.mubr.f32.mxu0 0.0
  %165 = vmatmul.mubr.f32.gmra.mrb[0].mxu0 %v45
  %v166 = vpop.f32.mrb[0].mxu0
  %v167 = vadd.f32 0.0, %v166
  %v168 = vpop.f32.mrb[0].mxu0
  %169 = vmatprep.mubr.f32.mxu0 0.0
  %170 = vmatmul.mubr.f32.gmra.mrb[0].mxu0 %v48
  %v171 = vpop.f32.mrb[0].mxu0
  %v172 = vadd.f32 0.0, %v171
  %v173 = vpop.f32.mrb[0].mxu0
  %174 = vmatprep.mubr.f32.mxu0 0.0
  %175 = vmatmul.mubr.f32.gmra.mrb[0].mxu0 %v51
  %v176 = vpop.f32.mrb[0].mxu0
  %v177 = vadd.f32 0.0, %v176
  %v178 = vpop.f32.mrb[0].mxu0
  %179 = vmatprep.mubr.f32.mxu0 0.0
  %180 = vmatmul.mubr.f32.gmra.mrb[0].mxu0 %v54
  %v181 = vpop.f32.mrb[0].mxu0
  %v182 = vadd.f32 0.0, %v181
  %v183 = vpop.f32.mrb[0].mxu0
  %184 = vmatprep.mubr.f32.mxu0 0.0
  %185 = vmatmul.mubr.f32.gmra.mrb[0].mxu0 %v57
  %v186 = vpop.f32.mrb[0].mxu0
  %v187 = vadd.f32 0.0, %v186
  %v188 = vpop.f32.mrb[0].mxu0
  %189 = vmatprep.mubr.f32.mxu0 0.0
  %190 = vmatmul.mubr.f32.gmra.mrb[0].mxu0 %v60
  %v191 = vpop.f32.mrb[0].mxu0
  %v192 = vadd.f32 0.0, %v191
  %v193 = vpop.f32.mrb[0].mxu0
  %194 = vmatprep.mubr.f32.mxu0 0.0
  %195 = vmatmul.mubr.f32.gmra.mrb[0].mxu0 %v63
  %v196 = vpop.f32.mrb[0].mxu0
  %v197 = vadd.f32 0.0, %v196
  %v198 = vpop.f32.mrb[0].mxu0
  %199 = vmatprep.mubr.f32.mxu0 0.0
  %200 = vmatmul.mubr.f32.gmra.mrb[0].mxu0 %v66
  %v201 = vpop.f32.mrb[0].mxu0
  %v202 = vadd.f32 0.0, %v201
  %v203 = vpop.f32.mrb[0].mxu0
  %204 = vmatprep.mubr.f32.mxu0 0.0
  %205 = vmatmul.mubr.f32.gmra.mrb[0].mxu0 %v69
  %v206 = vpop.f32.mrb[0].mxu0
  %v207 = vadd.f32 0.0, %v206
  %v208 = vpop.f32.mrb[0].mxu0
  %209 = vmatprep.mubr.f32.mxu0 0.0
  %210 = vmatmul.mubr.f32.gmra.mrb[0].mxu0 %v72
  %v211 = vpop.f32.mrb[0].mxu0
  %v212 = vadd.f32 0.0, %v211
  %v213 = vpop.f32.mrb[0].mxu0
  %214 = vmatprep.mubr.f32.mxu0 0.0
  %215 = vmatmul.mubr.f32.gmra.mrb[0].mxu0 %v75
  %v216 = vpop.f32.mrb[0].mxu0
  %v217 = vadd.f32 0.0, %v216
  %v218 = vpop.f32.mrb[0].mxu0
  %219 = vmatprep.mubr.f32.mxu0 0.0
  %220 = vmatmul.mubr.f32.gmra.mrb[0].mxu0 %v78
  %v221 = vpop.f32.mrb[0].mxu0
  %v222 = vadd.f32 0.0, %v221
  %v223 = vpop.f32.mrb[0].mxu0
  %224 = vdwg.mxu0
  %v225 = vpack.c.bf16 %v152, %v147
  %v226 = vpack.c.bf16 %v162, %v157
  %v227 = vpack.c.bf16 %v172, %v167
  %v228 = vpack.c.bf16 %v182, %v177
  %v229 = vpack.c.bf16 %v192, %v187
  %v230 = vpack.c.bf16 %v202, %v197
  %v231 = vpack.c.bf16 %v212, %v207
  %v232 = vpack.c.bf16 %v222, %v217
  %v241 = vunpack.c.l.b16 %v225
  %v242 = vunpack.c.h.b16 %v225
  %v243 = vunpack.c.l.b16 %v226
  %v244 = vunpack.c.h.b16 %v226
  %v245 = vunpack.c.l.b16 %v227
  %v246 = vunpack.c.h.b16 %v227
  %v247 = vunpack.c.l.b16 %v228
  %v248 = vunpack.c.h.b16 %v228
  %v249 = vunpack.c.l.b16 %v229
  %v250 = vunpack.c.h.b16 %v229
  %v251 = vunpack.c.l.b16 %v230
  %v252 = vunpack.c.h.b16 %v230
  %v253 = vunpack.c.l.b16 %v231
  %v254 = vunpack.c.h.b16 %v231
  %v255 = vunpack.c.l.b16 %v232
  %v256 = vunpack.c.h.b16 %v232
  %v257 = vpack.c.b16 %v241, %v241
  %v258 = vpack.c.b16 %v242, %v242
  %v259 = vpack.c.b16 %v243, %v243
  %v260 = vpack.c.b16 %v244, %v244
  %v261 = vpack.c.b16 %v245, %v245
  %v262 = vpack.c.b16 %v246, %v246
  %v263 = vpack.c.b16 %v247, %v247
  %v264 = vpack.c.b16 %v248, %v248
  %v265 = vpack.c.b16 %v249, %v249
  %v266 = vpack.c.b16 %v250, %v250
  %v267 = vpack.c.b16 %v251, %v251
  %v268 = vpack.c.b16 %v252, %v252
  %v269 = vpack.c.b16 %v253, %v253
  %v270 = vpack.c.b16 %v254, %v254
  %v271 = vpack.c.b16 %v255, %v255
  %v272 = vpack.c.b16 %v256, %v256
  %289 = vst [vmem:[%s2] sm:$0xf] %v257
  %290 = vst [vmem:[%s2 + $0x4] sm:$0xf] %v258
  %291 = vst [vmem:[%s2 + $0x8] sm:$0xf] %v259
  %292 = vst [vmem:[%s2 + $0xc] sm:$0xf] %v260
  %293 = vst [vmem:[%s2 + $0x10] sm:$0xf] %v261
  %294 = vst [vmem:[%s2 + $0x14] sm:$0xf] %v262
  %295 = vst [vmem:[%s2 + $0x18] sm:$0xf] %v263
  %296 = vst [vmem:[%s2 + $0x1c] sm:$0xf] %v264
  %297 = vst [vmem:[%s2 + $0x20] sm:$0xf] %v265
  %298 = vst [vmem:[%s2 + $0x24] sm:$0xf] %v266
  %299 = vst [vmem:[%s2 + $0x28] sm:$0xf] %v267
  %300 = vst [vmem:[%s2 + $0x2c] sm:$0xf] %v268
  %301 = vst [vmem:[%s2 + $0x30] sm:$0xf] %v269
  %302 = vst [vmem:[%s2 + $0x34] sm:$0xf] %v270
  %303 = vst [vmem:[%s2 + $0x38] sm:$0xf] %v271
  %304 = vst [vmem:[%s2 + $0x3c] sm:$0xf] %v272
  // Predicated region
  $region10: #{gcn_forward.3} parent=0 // pred_check
    _
  $region11: #{gcn_forward.3} parent=0 // pred_check_branch
    %306 = sbr.rel (0) target = $region13
  $region12: #{gcn_forward.3} parent=0 // pred_region
    _
  $region13: #{gcn_forward.3} parent=0 // pred_fallthru
    _
  // Predicated region
  $region14: #{gcn_forward.3} parent=0 // pred_check
    _
  $region15: #{gcn_forward.3} parent=0 // pred_check_branch
    %308 = sbr.rel (0) target = $region17
  $region16: #{gcn_forward.3} parent=0 // pred_region
    _
  $region17: #{gcn_forward.3} parent=0 // pred_fallthru
    _

// kernel: gcn_forward.5
$region0: #{gcn_forward.5}
  #allocation0 [shape = 'u32[]', space=smem, size = 0x4, offset = 0x4, fixed_abs, tag = 'smem constant byte address 0x4 - core index']
  #allocation1 [shape = 'u32[144,128]{1,0:T(1,128)}', space=vmem, size = 0x12000, scoped, tag = 'internal scratch']
  #allocation2 [shape = 'f32[128,128]{1,0:T(8,128)}', space=vmem, size = 0x10000, scoped, tag = 'scratch operand']
  %s0 = inlined_call_operand.vmem [shape: bf16[128,128], index: 0, kind: input, shape index: {}]
  %s1 = inlined_call_operand.vmem [shape: bf16[128,128], index: 1, kind: input, shape index: {}]
  %s2 = inlined_call_operand.vmem [shape: f32[128,128], index: 2, kind: input, shape index: {}]
  %s3 = inlined_call_operand.vmem [shape: f32[128,128], index: 3, kind: output, shape index: {}]
  %s4 = sld [smem:[#allocation0]]
  $region30: #{gcn_forward.5} parent=0
    _
  %s6 = ssub.s32 1, %s4
  %s7 = scalar_select 0, %s6, %s4
  // Predicated region
  $region2: #{gcn_forward.5} parent=0 // pred_check
    _
  $region3: #{gcn_forward.5} parent=0 // pred_check_branch
    %9 = sbr.rel (0) target = $region5
  $region4: #{gcn_forward.5} parent=0 // pred_region
    _
  $region5: #{gcn_forward.5} parent=0 // pred_fallthru
    _
  // Predicated region
  $region6: #{gcn_forward.5} parent=0 // pred_check
    _
  $region7: #{gcn_forward.5} parent=0 // pred_check_branch
    %11 = sbr.rel (0) target = $region9
  $region8: #{gcn_forward.5} parent=0 // pred_region
    _
  $region9: #{gcn_forward.5} parent=0 // pred_fallthru
    _
  // Predicated region
  $region10: #{gcn_forward.5} parent=0 // pred_check
    _
  $region11: #{gcn_forward.5} parent=0 // pred_check_branch
    %13 = sbr.rel (0) target = $region13
  $region12: #{gcn_forward.5} parent=0 // pred_region
    _
  $region13: #{gcn_forward.5} parent=0 // pred_fallthru
    _
  %p15 = scmp.eq.s32.totalorder 0, 0
  // Predicated region
  $region14: #{gcn_forward.5} parent=0 // pred_check
    %p16 = pneg %p15
  $region15: #{gcn_forward.5} parent=0 // pred_check_branch
    %18 = sbr.rel (%p16) target = $region17
  $region16: #{gcn_forward.5} parent=0 // pred_region
    %19 = vst [vmem:[#allocation2] sm:$0xff] 0.0
    %20 = vst [vmem:[#allocation2 + $0x8] sm:$0xff] 0.0
    %21 = vst [vmem:[#allocation2 + $0x10] sm:$0xff] 0.0
    %22 = vst [vmem:[#allocation2 + $0x18] sm:$0xff] 0.0
    %23 = vst [vmem:[#allocation2 + $0x20] sm:$0xff] 0.0
    %24 = vst [vmem:[#allocation2 + $0x28] sm:$0xff] 0.0
    %25 = vst [vmem:[#allocation2 + $0x30] sm:$0xff] 0.0
    %26 = vst [vmem:[#allocation2 + $0x38] sm:$0xff] 0.0
    %27 = vst [vmem:[#allocation2 + $0x40] sm:$0xff] 0.0
    %28 = vst [vmem:[#allocation2 + $0x48] sm:$0xff] 0.0
    %29 = vst [vmem:[#allocation2 + $0x50] sm:$0xff] 0.0
    %30 = vst [vmem:[#allocation2 + $0x58] sm:$0xff] 0.0
    %31 = vst [vmem:[#allocation2 + $0x60] sm:$0xff] 0.0
    %32 = vst [vmem:[#allocation2 + $0x68] sm:$0xff] 0.0
    %33 = vst [vmem:[#allocation2 + $0x70] sm:$0xff] 0.0
    %34 = vst [vmem:[#allocation2 + $0x78] sm:$0xff] 0.0
  $region17: #{gcn_forward.5} parent=0 // pred_fallthru
    _
  %v35 = vld [vmem:[#allocation2] sm:$0xff]
  %v36 = vld [vmem:[#allocation2 + $0x8] sm:$0xff]
  %v37 = vld [vmem:[#allocation2 + $0x10] sm:$0xff]
  %v38 = vld [vmem:[#allocation2 + $0x18] sm:$0xff]
  %v39 = vld [vmem:[#allocation2 + $0x20] sm:$0xff]
  %v40 = vld [vmem:[#allocation2 + $0x28] sm:$0xff]
  %v41 = vld [vmem:[#allocation2 + $0x30] sm:$0xff]
  %v42 = vld [vmem:[#allocation2 + $0x38] sm:$0xff]
  %v43 = vld [vmem:[#allocation2 + $0x40] sm:$0xff]
  %v44 = vld [vmem:[#allocation2 + $0x48] sm:$0xff]
  %v45 = vld [vmem:[#allocation2 + $0x50] sm:$0xff]
  %v46 = vld [vmem:[#allocation2 + $0x58] sm:$0xff]
  %v47 = vld [vmem:[#allocation2 + $0x60] sm:$0xff]
  %v48 = vld [vmem:[#allocation2 + $0x68] sm:$0xff]
  %v49 = vld [vmem:[#allocation2 + $0x70] sm:$0xff]
  %v50 = vld [vmem:[#allocation2 + $0x78] sm:$0xff]
  %v51 = vld [vmem:[%s0] sm:$0xf]
  %v52 = vld [vmem:[%s0 + $0x4] sm:$0xf]
  %v53 = vld [vmem:[%s0 + $0x8] sm:$0xf]
  %v54 = vld [vmem:[%s0 + $0xc] sm:$0xf]
  %v55 = vld [vmem:[%s0 + $0x10] sm:$0xf]
  %v56 = vld [vmem:[%s0 + $0x14] sm:$0xf]
  %v57 = vld [vmem:[%s0 + $0x18] sm:$0xf]
  %v58 = vld [vmem:[%s0 + $0x1c] sm:$0xf]
  %v59 = vld [vmem:[%s0 + $0x20] sm:$0xf]
  %v60 = vld [vmem:[%s0 + $0x24] sm:$0xf]
  %v61 = vld [vmem:[%s0 + $0x28] sm:$0xf]
  %v62 = vld [vmem:[%s0 + $0x2c] sm:$0xf]
  %v63 = vld [vmem:[%s0 + $0x30] sm:$0xf]
  %v64 = vld [vmem:[%s0 + $0x34] sm:$0xf]
  %v65 = vld [vmem:[%s0 + $0x38] sm:$0xf]
  %v66 = vld [vmem:[%s0 + $0x3c] sm:$0xf]
  %v67 = vld [vmem:[%s1] sm:$0xf]
  %v68 = vld [vmem:[%s1 + $0x4] sm:$0xf]
  %v69 = vld [vmem:[%s1 + $0x8] sm:$0xf]
  %v70 = vld [vmem:[%s1 + $0xc] sm:$0xf]
  %v71 = vld [vmem:[%s1 + $0x10] sm:$0xf]
  %v72 = vld [vmem:[%s1 + $0x14] sm:$0xf]
  %v73 = vld [vmem:[%s1 + $0x18] sm:$0xf]
  %v74 = vld [vmem:[%s1 + $0x1c] sm:$0xf]
  %v75 = vld [vmem:[%s1 + $0x20] sm:$0xf]
  %v76 = vld [vmem:[%s1 + $0x24] sm:$0xf]
  %v77 = vld [vmem:[%s1 + $0x28] sm:$0xf]
  %v78 = vld [vmem:[%s1 + $0x2c] sm:$0xf]
  %v79 = vld [vmem:[%s1 + $0x30] sm:$0xf]
  %v80 = vld [vmem:[%s1 + $0x34] sm:$0xf]
  %v81 = vld [vmem:[%s1 + $0x38] sm:$0xf]
  %v82 = vld [vmem:[%s1 + $0x3c] sm:$0xf]
  %v99 = vunpack.c.l.b16 %v51
  %v100 = vunpack.c.l.b16 %v52
  %v101 = vunpack.c.l.b16 %v53
  %v102 = vunpack.c.l.b16 %v54
  %v103 = vunpack.c.l.b16 %v55
  %v104 = vunpack.c.l.b16 %v56
  %v105 = vunpack.c.l.b16 %v57
  %v106 = vunpack.c.l.b16 %v58
  %v107 = vunpack.c.l.b16 %v59
  %v108 = vunpack.c.l.b16 %v60
  %v109 = vunpack.c.l.b16 %v61
  %v110 = vunpack.c.l.b16 %v62
  %v111 = vunpack.c.l.b16 %v63
  %v112 = vunpack.c.l.b16 %v64
  %v113 = vunpack.c.l.b16 %v65
  %v114 = vunpack.c.l.b16 %v66
  %v115 = vpack.c.b16 %v100, %v99
  %v116 = vpack.c.b16 %v102, %v101
  %v117 = vpack.c.b16 %v104, %v103
  %v118 = vpack.c.b16 %v106, %v105
  %v119 = vpack.c.b16 %v108, %v107
  %v120 = vpack.c.b16 %v110, %v109
  %v121 = vpack.c.b16 %v112, %v111
  %v122 = vpack.c.b16 %v114, %v113
  %v147 = vunpack.c.l.b16 %v67
  %v148 = vunpack.c.l.b16 %v68
  %v149 = vunpack.c.l.b16 %v69
  %v150 = vunpack.c.l.b16 %v70
  %v151 = vunpack.c.l.b16 %v71
  %v152 = vunpack.c.l.b16 %v72
  %v153 = vunpack.c.l.b16 %v73
  %v154 = vunpack.c.l.b16 %v74
  %v155 = vunpack.c.l.b16 %v75
  %v156 = vunpack.c.l.b16 %v76
  %v157 = vunpack.c.l.b16 %v77
  %v158 = vunpack.c.l.b16 %v78
  %v159 = vunpack.c.l.b16 %v79
  %v160 = vunpack.c.l.b16 %v80
  %v161 = vunpack.c.l.b16 %v81
  %v162 = vunpack.c.l.b16 %v82
  %v163 = vpack.c.b16 %v148, %v147
  %v164 = vpack.c.b16 %v150, %v149
  %v165 = vpack.c.b16 %v152, %v151
  %v166 = vpack.c.b16 %v154, %v153
  %v167 = vpack.c.b16 %v156, %v155
  %v168 = vpack.c.b16 %v158, %v157
  %v169 = vpack.c.b16 %v160, %v159
  %v170 = vpack.c.b16 %v162, %v161
  %179 = vmatprep.subr.bf16.mxu0 0
  %180 = vmatpush1.bf16.msra.mxu0 %v163
  %181 = vmatprep.subr.bf16.mxu0 0
  %182 = vmatpush1.bf16.msra.mxu0 %v164
  %183 = vmatprep.subr.bf16.mxu0 0
  %184 = vmatpush1.bf16.msra.mxu0 %v165
  %185 = vmatprep.subr.bf16.mxu0 0
  %186 = vmatpush1.bf16.msra.mxu0 %v166
  %187 = vmatprep.subr.bf16.mxu0 0
  %188 = vmatpush1.bf16.msra.mxu0 %v167
  %189 = vmatprep.subr.bf16.mxu0 0
  %190 = vmatpush1.bf16.msra.mxu0 %v168
  %191 = vmatprep.subr.bf16.mxu0 0
  %192 = vmatpush1.bf16.msra.mxu0 %v169
  %193 = vmatprep.subr.bf16.mxu0 0
  %194 = vmatpush1.bf16.msra.mxu0 %v170
  %195 = vmatprep.subr.bf16.mxu0 0
  %196 = vmatpush1.bf16.msra.mxu0 0
  %197 = vmatprep.subr.bf16.mxu0 0
  %198 = vmatpush1.bf16.msra.mxu0 0
  %199 = vmatprep.subr.bf16.mxu0 0
  %200 = vmatpush1.bf16.msra.mxu0 0
  %201 = vmatprep.subr.bf16.mxu0 0
  %202 = vmatpush1.bf16.msra.mxu0 0
  %203 = vmatprep.subr.bf16.mxu0 0
  %204 = vmatpush1.bf16.msra.mxu0 0
  %205 = vmatprep.subr.bf16.mxu0 0
  %206 = vmatpush1.bf16.msra.mxu0 0
  %207 = vmatprep.subr.bf16.mxu0 0
  %208 = vmatpush1.bf16.msra.mxu0 0
  %209 = vmatprep.subr.bf16.mxu0 0
  %210 = vmatpush1.bf16.msra.mxu0 0
  %211 = vmatprep.mubr.bf16.mxu0 0
  %212 = vmatmul.mubr.bf16.gmra.mrb[0].mxu0 %v115
  %v213 = vpop.f32.mrb[0].mxu0
  %v214 = vadd.f32 0.0, %v213
  %v215 = vpop.f32.mrb[0].mxu0
  %v216 = vpop.f32.mrb[0].mxu0
  %v217 = vadd.f32 0.0, %v216
  %v218 = vpop.f32.mrb[0].mxu0
  %219 = vmatprep.mubr.bf16.mxu0 0
  %220 = vmatmul.mubr.bf16.gmra.mrb[0].mxu0 %v116
  %v221 = vpop.f32.mrb[0].mxu0
  %v222 = vadd.f32 0.0, %v221
  %v223 = vpop.f32.mrb[0].mxu0
  %v224 = vpop.f32.mrb[0].mxu0
  %v225 = vadd.f32 0.0, %v224
  %v226 = vpop.f32.mrb[0].mxu0
  %227 = vmatprep.mubr.bf16.mxu0 0
  %228 = vmatmul.mubr.bf16.gmra.mrb[0].mxu0 %v117
  %v229 = vpop.f32.mrb[0].mxu0
  %v230 = vadd.f32 0.0, %v229
  %v231 = vpop.f32.mrb[0].mxu0
  %v232 = vpop.f32.mrb[0].mxu0
  %v233 = vadd.f32 0.0, %v232
  %v234 = vpop.f32.mrb[0].mxu0
  %235 = vmatprep.mubr.bf16.mxu0 0
  %236 = vmatmul.mubr.bf16.gmra.mrb[0].mxu0 %v118
  %v237 = vpop.f32.mrb[0].mxu0
  %v238 = vadd.f32 0.0, %v237
  %v239 = vpop.f32.mrb[0].mxu0
  %v240 = vpop.f32.mrb[0].mxu0
  %v241 = vadd.f32 0.0, %v240
  %v242 = vpop.f32.mrb[0].mxu0
  %243 = vmatprep.mubr.bf16.mxu0 0
  %244 = vmatmul.mubr.bf16.gmra.mrb[0].mxu0 %v119
  %v245 = vpop.f32.mrb[0].mxu0
  %v246 = vadd.f32 0.0, %v245
  %v247 = vpop.f32.mrb[0].mxu0
  %v248 = vpop.f32.mrb[0].mxu0
  %v249 = vadd.f32 0.0, %v248
  %v250 = vpop.f32.mrb[0].mxu0
  %251 = vmatprep.mubr.bf16.mxu0 0
  %252 = vmatmul.mubr.bf16.gmra.mrb[0].mxu0 %v120
  %v253 = vpop.f32.mrb[0].mxu0
  %v254 = vadd.f32 0.0, %v253
  %v255 = vpop.f32.mrb[0].mxu0
  %v256 = vpop.f32.mrb[0].mxu0
  %v257 = vadd.f32 0.0, %v256
  %v258 = vpop.f32.mrb[0].mxu0
  %259 = vmatprep.mubr.bf16.mxu0 0
  %260 = vmatmul.mubr.bf16.gmra.mrb[0].mxu0 %v121
  %v261 = vpop.f32.mrb[0].mxu0
  %v262 = vadd.f32 0.0, %v261
  %v263 = vpop.f32.mrb[0].mxu0
  %v264 = vpop.f32.mrb[0].mxu0
  %v265 = vadd.f32 0.0, %v264
  %v266 = vpop.f32.mrb[0].mxu0
  %267 = vmatprep.mubr.bf16.mxu0 0
  %268 = vmatmul.mubr.bf16.gmra.mrb[0].mxu0 %v122
  %v269 = vpop.f32.mrb[0].mxu0
  %v270 = vadd.f32 0.0, %v269
  %v271 = vpop.f32.mrb[0].mxu0
  %v272 = vpop.f32.mrb[0].mxu0
  %v273 = vadd.f32 0.0, %v272
  %v274 = vpop.f32.mrb[0].mxu0
  %275 = vdwg.mxu0
  %v276 = vadd.f32 %v35, %v214
  %v277 = vadd.f32 %v36, %v217
  %v278 = vadd.f32 %v37, %v222
  %v279 = vadd.f32 %v38, %v225
  %v280 = vadd.f32 %v39, %v230
  %v281 = vadd.f32 %v40, %v233
  %v282 = vadd.f32 %v41, %v238
  %v283 = vadd.f32 %v42, %v241
  %v284 = vadd.f32 %v43, %v246
  %v285 = vadd.f32 %v44, %v249
  %v286 = vadd.f32 %v45, %v254
  %v287 = vadd.f32 %v46, %v257
  %v288 = vadd.f32 %v47, %v262
  %v289 = vadd.f32 %v48, %v265
  %v290 = vadd.f32 %v49, %v270
  %v291 = vadd.f32 %v50, %v273
  %292 = vst [vmem:[#allocation2] sm:$0xff] %v276
  %293 = vst [vmem:[#allocation2 + $0x8] sm:$0xff] %v277
  %294 = vst [vmem:[#allocation2 + $0x10] sm:$0xff] %v278
  %295 = vst [vmem:[#allocation2 + $0x18] sm:$0xff] %v279
  %296 = vst [vmem:[#allocation2 + $0x20] sm:$0xff] %v280
  %297 = vst [vmem:[#allocation2 + $0x28] sm:$0xff] %v281
  %298 = vst [vmem:[#allocation2 + $0x30] sm:$0xff] %v282
  %299 = vst [vmem:[#allocation2 + $0x38] sm:$0xff] %v283
  %300 = vst [vmem:[#allocation2 + $0x40] sm:$0xff] %v284
  %301 = vst [vmem:[#allocation2 + $0x48] sm:$0xff] %v285
  %302 = vst [vmem:[#allocation2 + $0x50] sm:$0xff] %v286
  %303 = vst [vmem:[#allocation2 + $0x58] sm:$0xff] %v287
  %304 = vst [vmem:[#allocation2 + $0x60] sm:$0xff] %v288
  %305 = vst [vmem:[#allocation2 + $0x68] sm:$0xff] %v289
  %306 = vst [vmem:[#allocation2 + $0x70] sm:$0xff] %v290
  %307 = vst [vmem:[#allocation2 + $0x78] sm:$0xff] %v291
  // Predicated region
  $region18: #{gcn_forward.5} parent=0 // pred_check
    %p308 = pneg %p15
  $region19: #{gcn_forward.5} parent=0 // pred_check_branch
    %310 = sbr.rel (%p308) target = $region21
  $region20: #{gcn_forward.5} parent=0 // pred_region
    %v311 = vld [vmem:[#allocation2] sm:$0xff]
    %v312 = vld [vmem:[#allocation2 + $0x8] sm:$0xff]
    %v313 = vld [vmem:[#allocation2 + $0x10] sm:$0xff]
    %v314 = vld [vmem:[#allocation2 + $0x18] sm:$0xff]
    %v315 = vld [vmem:[#allocation2 + $0x20] sm:$0xff]
    %v316 = vld [vmem:[#allocation2 + $0x28] sm:$0xff]
    %v317 = vld [vmem:[#allocation2 + $0x30] sm:$0xff]
    %v318 = vld [vmem:[#allocation2 + $0x38] sm:$0xff]
    %v319 = vld [vmem:[#allocation2 + $0x40] sm:$0xff]
    %v320 = vld [vmem:[#allocation2 + $0x48] sm:$0xff]
    %v321 = vld [vmem:[#allocation2 + $0x50] sm:$0xff]
    %v322 = vld [vmem:[#allocation2 + $0x58] sm:$0xff]
    %v323 = vld [vmem:[#allocation2 + $0x60] sm:$0xff]
    %v324 = vld [vmem:[#allocation2 + $0x68] sm:$0xff]
    %v325 = vld [vmem:[#allocation2 + $0x70] sm:$0xff]
    %v326 = vld [vmem:[#allocation2 + $0x78] sm:$0xff]
    %v327 = vld [vmem:[%s2] sm:$0xff]
    %v328 = vld [vmem:[%s2 + $0x8] sm:$0xff]
    %v329 = vld [vmem:[%s2 + $0x10] sm:$0xff]
    %v330 = vld [vmem:[%s2 + $0x18] sm:$0xff]
    %v331 = vld [vmem:[%s2 + $0x20] sm:$0xff]
    %v332 = vld [vmem:[%s2 + $0x28] sm:$0xff]
    %v333 = vld [vmem:[%s2 + $0x30] sm:$0xff]
    %v334 = vld [vmem:[%s2 + $0x38] sm:$0xff]
    %v335 = vld [vmem:[%s2 + $0x40] sm:$0xff]
    %v336 = vld [vmem:[%s2 + $0x48] sm:$0xff]
    %v337 = vld [vmem:[%s2 + $0x50] sm:$0xff]
    %v338 = vld [vmem:[%s2 + $0x58] sm:$0xff]
    %v339 = vld [vmem:[%s2 + $0x60] sm:$0xff]
    %v340 = vld [vmem:[%s2 + $0x68] sm:$0xff]
    %v341 = vld [vmem:[%s2 + $0x70] sm:$0xff]
    %v342 = vld [vmem:[%s2 + $0x78] sm:$0xff]
    %v343 = vadd.f32 %v311, %v327
    %v344 = vadd.f32 %v312, %v328
    %v345 = vadd.f32 %v313, %v329
    %v346 = vadd.f32 %v314, %v330
    %v347 = vadd.f32 %v315, %v331
    %v348 = vadd.f32 %v316, %v332
    %v349 = vadd.f32 %v317, %v333
    %v350 = vadd.f32 %v318, %v334
    %v351 = vadd.f32 %v319, %v335
    %v352 = vadd.f32 %v320, %v336
    %v353 = vadd.f32 %v321, %v337
    %v354 = vadd.f32 %v322, %v338
    %v355 = vadd.f32 %v323, %v339
    %v356 = vadd.f32 %v324, %v340
    %v357 = vadd.f32 %v325, %v341
    %v358 = vadd.f32 %v326, %v342
    %359 = vst [vmem:[%s3] sm:$0xff] %v343
    %360 = vst [vmem:[%s3 + $0x8] sm:$0xff] %v344
    %361 = vst [vmem:[%s3 + $0x10] sm:$0xff] %v345
    %362 = vst [vmem:[%s3 + $0x18] sm:$0xff] %v346
    %363 = vst [vmem:[%s3 + $0x20] sm:$0xff] %v347
    %364 = vst [vmem:[%s3 + $0x28] sm:$0xff] %v348
    %365 = vst [vmem:[%s3 + $0x30] sm:$0xff] %v349
    %366 = vst [vmem:[%s3 + $0x38] sm:$0xff] %v350
    %367 = vst [vmem:[%s3 + $0x40] sm:$0xff] %v351
    %368 = vst [vmem:[%s3 + $0x48] sm:$0xff] %v352
    %369 = vst [vmem:[%s3 + $0x50] sm:$0xff] %v353
    %370 = vst [vmem:[%s3 + $0x58] sm:$0xff] %v354
    %371 = vst [vmem:[%s3 + $0x60] sm:$0xff] %v355
    %372 = vst [vmem:[%s3 + $0x68] sm:$0xff] %v356
    %373 = vst [vmem:[%s3 + $0x70] sm:$0xff] %v357
    %374 = vst [vmem:[%s3 + $0x78] sm:$0xff] %v358
  $region21: #{gcn_forward.5} parent=0 // pred_fallthru
    _
  // Predicated region
  $region22: #{gcn_forward.5} parent=0 // pred_check
    _
  $region23: #{gcn_forward.5} parent=0 // pred_check_branch
    %376 = sbr.rel (0) target = $region25
  $region24: #{gcn_forward.5} parent=0 // pred_region
    _
  $region25: #{gcn_forward.5} parent=0 // pred_fallthru
    _
  // Predicated region
  $region26: #{gcn_forward.5} parent=0 // pred_check
    _
  $region27: #{gcn_forward.5} parent=0 // pred_check_branch
    %378 = sbr.rel (0) target = $region29
  $region28: #{gcn_forward.5} parent=0 // pred_region
    _
  $region29: #{gcn_forward.5} parent=0 // pred_fallthru
    _

</llo_original>
